<compile_context>
chip_gen: v7x
topology: tpu7x:2x2x1
jax: 0.10.0
libtpu: 0.0.40
codegen_flags: <defaults>
</compile_context>

<pallas_src>
import numpy as np
import jax
import jax.numpy as jnp
from jax import lax
from jax.experimental import pallas as pl
from jax.experimental.pallas import tpu as pltpu


# ----------------------------- Pallas kernel ---------------------------------

def _res_layer_kernel(w_ref, b_ref, xi_ref, x_ref, o_ref):
    """One batch element per grid step.

    w:[Cout,Cin]  b:[Cout,1]  xi:[1,Cin,HW]  x:[1,Cout,HW]  o:[1,Cout,HW]
    o = W @ xi + b + x     (1x1 conv as a channel matmul, fused bias + residual add)
    """
    xi = xi_ref[0]                                              # [Cin, HW]
    # bf16 MXU operands (native on v6e/v7x), f32 accumulation.
    acc = jnp.dot(
        w_ref[...].astype(jnp.bfloat16),
        xi.astype(jnp.bfloat16),
        preferred_element_type=jnp.float32,
    )                                                           # [Cout, HW]
    # Bias + residual add stay in f32 on the VPU; lane-dense (HW=256) store.
    o_ref[0] = (acc + b_ref[...] + x_ref[0]).astype(o_ref.dtype)


# ------------------------------- wrapper --------------------------------------

def res_layer_forward(params, x_i, x):
    """params['w']: [Cout, Cin, 1, 1], params['b']: [Cout].  x_i/x in NCHW."""
    N, Cin, H, W = x_i.shape
    Cout = params["w"].shape[0]
    HW = H * W

    # One-time parameter prep (pure reshapes, no transposes).
    w2d = params["w"].reshape(Cout, Cin).astype(jnp.float32)
    b2d = params["b"].reshape(Cout, 1).astype(jnp.float32)

    # Lane-dense views: last dim = H*W (multiple of 128 for the test sizes).
    xi_f = x_i.reshape(N, Cin, HW).astype(jnp.float32)
    x_f = x.reshape(N, Cout, HW).astype(jnp.float32)

    flops = 2 * N * Cout * Cin * HW + 2 * N * Cout * HW
    bytes_accessed = 4 * (xi_f.size + x_f.size + w2d.size + b2d.size + N * Cout * HW)

    out = pl.pallas_call(
        _res_layer_kernel,
        out_shape=jax.ShapeDtypeStruct((N, Cout, HW), jnp.float32),
        grid=(N,),
        in_specs=[
            pl.BlockSpec((Cout, Cin), lambda n: (0, 0)),        # weight (resident)
            pl.BlockSpec((Cout, 1), lambda n: (0, 0)),          # bias   (resident)
            pl.BlockSpec((1, Cin, HW), lambda n: (n, 0, 0)),    # x_i tile
            pl.BlockSpec((1, Cout, HW), lambda n: (n, 0, 0)),   # residual tile
        ],
        out_specs=pl.BlockSpec((1, Cout, HW), lambda n: (n, 0, 0)),
        compiler_params=pltpu.CompilerParams(
            dimension_semantics=("parallel",)),                 # v7x: 2 TCs share batch
        cost_estimate=pl.CostEstimate(
            flops=flops, transcendentals=0, bytes_accessed=bytes_accessed),
    )(w2d, b2d, xi_f, x_f)

    return out.reshape(N, Cout, H, W)


# --------------------------- pure-JAX reference ------------------------------

def _ref_forward(params, x_i, x):
    dn = ("NCHW", "OIHW", "NCHW")
    y = lax.conv_general_dilated(
        x_i, params["w"], (1, 1), "VALID",
        dimension_numbers=dn, precision=lax.Precision.HIGHEST)
    return y + params["b"][None, :, None, None] + x


# ----------------------------------- main -------------------------------------

if __name__ == "__main__":
    N, in_c, out_c, H, W = 2, 4, 8, 16, 16

    key = jax.random.PRNGKey(0)
    k1, k2, kw, kb = jax.random.split(key, 4)
    x_i = jax.random.normal(k1, (N, in_c, H, W), jnp.float32)
    x = jax.random.normal(k2, (N, out_c, H, W), jnp.float32)   # residual (out_c channels)
    params = {
        "w": 0.05 * jax.random.normal(kw, (out_c, in_c, 1, 1), jnp.float32),
        "b": 0.05 * jax.random.normal(kb, (out_c,), jnp.float32),
    }

    out = jax.jit(res_layer_forward)(params, x_i, x)
    out = jax.block_until_ready(out)

    ref = _ref_forward(params, x_i, x)
    np.testing.assert_allclose(np.asarray(out), np.asarray(ref), rtol=1e-2, atol=1e-2)
    assert out.shape == (N, out_c, H, W)
    print("KERNEL_OK")
</pallas_src>

<mosaic_0001>
module attributes {stable_mosaic.version = 11 : i64} {
  func.func @_res_layer_kernel(%arg0: i32, %arg1: memref<8x4xf32, #tpu.memory_space<vmem>>, %arg2: memref<8x1xf32, #tpu.memory_space<vmem>>, %arg3: memref<1x4x256xf32, #tpu.memory_space<vmem>>, %arg4: memref<1x8x256xf32, #tpu.memory_space<vmem>>, %arg5: memref<1x8x256xf32, #tpu.memory_space<vmem>>) attributes {dimension_semantics = [#tpu.dimension_semantics<parallel>], iteration_bounds = array<i64: 2>, scalar_prefetch = 0 : i64, scratch_operands = 0 : i64, tpu.core_type = #tpu.core_type<tc>, window_params = [{pipeline_mode = #tpu.pipeline_mode<synchronous>, transform_indices = @transform_0, window_bounds = array<i64: 8, 4>}, {pipeline_mode = #tpu.pipeline_mode<synchronous>, transform_indices = @transform_1, window_bounds = array<i64: 8, 1>}, {transform_indices = @transform_2, window_bounds = array<i64: 1, 4, 256>}, {transform_indices = @transform_3, window_bounds = array<i64: 1, 8, 256>}, {transform_indices = @transform_4, window_bounds = array<i64: 1, 8, 256>}]} {
    %c0 = arith.constant 0 : index
    %c0_0 = arith.constant 0 : index
    %c0_1 = arith.constant 0 : index
    %0 = vector.load %arg3[%c0, %c0_0, %c0_1] : memref<1x4x256xf32, #tpu.memory_space<vmem>>, vector<1x4x256xf32>
    %1 = vector.shape_cast %0 : vector<1x4x256xf32> to vector<4x256xf32>
    %c0_2 = arith.constant 0 : index
    %c0_3 = arith.constant 0 : index
    %2 = vector.load %arg1[%c0_2, %c0_3] : memref<8x4xf32, #tpu.memory_space<vmem>>, vector<8x4xf32>
    %3 = arith.truncf %2 : vector<8x4xf32> to vector<8x4xbf16>
    %4 = arith.truncf %1 : vector<4x256xf32> to vector<4x256xbf16>
    %cst = arith.constant dense<0.000000e+00> : vector<8x256xf32>
    %5 = tpu.matmul %3, %4, %cst {dimension_numbers = #tpu.dot_dimension_numbers<[1], [0], [0], [1], [0, 0, 1, 1], [], []>} : vector<8x4xbf16>, vector<4x256xbf16>, vector<8x256xf32> -> vector<8x256xf32>
    %c0_4 = arith.constant 0 : index
    %c0_5 = arith.constant 0 : index
    %6 = vector.load %arg2[%c0_4, %c0_5] : memref<8x1xf32, #tpu.memory_space<vmem>>, vector<8x1xf32>
    %7 = vector.broadcast %6 : vector<8x1xf32> to vector<8x256xf32>
    %8 = arith.addf %5, %7 : vector<8x256xf32>
    %c0_6 = arith.constant 0 : index
    %c0_7 = arith.constant 0 : index
    %c0_8 = arith.constant 0 : index
    %9 = vector.load %arg4[%c0_6, %c0_7, %c0_8] : memref<1x8x256xf32, #tpu.memory_space<vmem>>, vector<1x8x256xf32>
    %10 = vector.shape_cast %9 : vector<1x8x256xf32> to vector<8x256xf32>
    %11 = arith.addf %8, %10 : vector<8x256xf32>
    %c0_9 = arith.constant 0 : index
    %c0_10 = arith.constant 0 : index
    %c0_11 = arith.constant 0 : index
    %12 = vector.load %arg5[%c0_9, %c0_10, %c0_11] : memref<1x8x256xf32, #tpu.memory_space<vmem>>, vector<1x8x256xf32>
    %13 = vector.shape_cast %12 : vector<1x8x256xf32> to vector<8x256xf32>
    %14 = vector.shape_cast %11 : vector<8x256xf32> to vector<1x8x256xf32>
    tpu.vector_store %arg5[%c0_9, %c0_10, %c0_11], %14 {strides = array<i32>} : memref<1x8x256xf32, #tpu.memory_space<vmem>>, vector<1x8x256xf32>,
    return
  }
  func.func @transform_0(%arg0: i32) -> (i32, i32) {
    %c0_i32 = arith.constant 0 : i32
    %c0_i32_0 = arith.constant 0 : i32
    %c0_i32_1 = arith.constant 0 : i32
    return %c0_i32, %c0_i32_0 : i32, i32
  }
  func.func @transform_1(%arg0: i32) -> (i32, i32) {
    %c0_i32 = arith.constant 0 : i32
    %c0_i32_0 = arith.constant 0 : i32
    %c0_i32_1 = arith.constant 0 : i32
    return %c0_i32, %c0_i32_0 : i32, i32
  }
  func.func @transform_2(%arg0: i32) -> (i32, i32, i32) {
    %c0_i32 = arith.constant 0 : i32
    %c0_i32_0 = arith.constant 0 : i32
    %c0_i32_1 = arith.constant 0 : i32
    return %arg0, %c0_i32, %c0_i32_0 : i32, i32, i32
  }
  func.func @transform_3(%arg0: i32) -> (i32, i32, i32) {
    %c0_i32 = arith.constant 0 : i32
    %c0_i32_0 = arith.constant 0 : i32
    %c0_i32_1 = arith.constant 0 : i32
    return %arg0, %c0_i32, %c0_i32_0 : i32, i32, i32
  }
  func.func @transform_4(%arg0: i32) -> (i32, i32, i32) {
    %c0_i32 = arith.constant 0 : i32
    %c0_i32_0 = arith.constant 0 : i32
    %c0_i32_1 = arith.constant 0 : i32
    return %arg0, %c0_i32, %c0_i32_0 : i32, i32, i32
  }
}

</mosaic_0001>

<llo_original>
// kernel: res_layer_forward.1
$region0: #{res_layer_forward.1}
  #allocation0 [shape = 'u32[]', space=smem, size = 0x4, offset = 0x4, fixed_abs, tag = 'smem constant byte address 0x4 - core index']
  #allocation1 [shape = 'u32[144,128]{1,0:T(1,128)}', space=vmem, size = 0x12000, scoped, tag = 'internal scratch']
  %s0 = inlined_call_operand.vmem [shape: f32[8,4], index: 0, kind: input, shape index: {}]
  %s1 = inlined_call_operand.vmem [shape: f32[8,1], index: 1, kind: input, shape index: {}]
  %s2 = inlined_call_operand.vmem [shape: f32[2,4,256], index: 2, kind: input, shape index: {}]
  %s3 = inlined_call_operand.vmem [shape: f32[2,8,256], index: 3, kind: input, shape index: {}]
  %s4 = inlined_call_operand.vmem [shape: f32[2,8,256], index: 4, kind: output, shape index: {}]
  %s5 = sld [smem:[#allocation0]]
  $region49: #{res_layer_forward.1} parent=0
    _
  %s7 = ssub.s32 1, %s5
  %s8 = scalar_select 0, %s7, %s5
  loop: start=0, step=1, limit=4
  $region2: #{res_layer_forward.1} parent=0 // loop_pre_header
    _
  $region3: #{res_layer_forward.1} parent=0 // loop_header
    %s10 = sphi 0, %s14
    %p11 = scmp.ge.s32.totalorder %s10, 4
    %s18 = sphi 0, %s18
    %s20 = sphi 0, %s18
    %s21 = sphi 0, %s20
    %s35 = sphi 0, %s21
    %s39 = sphi 0, %s39
    %s41 = sphi 0, %s39
    %s42 = sphi 0, %s41
    %s56 = sphi 0, %s42
    %s62 = sphi 0, %s64
    %s65 = sphi 0, %s62
    %s66 = sphi 0, %s65
    %s82 = sphi 0, %s66
    %s88 = sphi 0, %s90
    %s91 = sphi 0, %s88
    %s92 = sphi 0, %s91
    %s108 = sphi 0, %s92
    %s114 = sphi 0, %s116
    %s117 = sphi 0, %s114
    %s118 = sphi 0, %s117
    %s134 = sphi 0, %s118
  $region4: #{res_layer_forward.1} parent=0 // loop_header_branch
    %13 = sbr.rel (%p11) target = $region8
  $region5: #{res_layer_forward.1} parent=0 // loop_body
    %s15 = ssub.s32 %s10, 1
    %s16 = ssub.s32 %s10, 2
    %s17 = sadd.s32 %s10, 1
    %s19 = sadd.s32 %s18, 1
    %p22 = scmp.eq.s32.totalorder %s10, 1
    %p23 = scmp.ne.s32.totalorder %s18, %s20
    %p24 = scmp.eq.s32.totalorder %s10, 0
    %p25 = por %p23, %p24
    %p26 = scmp.ne.s32.totalorder %s18, %s20
    %p27 = scmp.eq.s32.totalorder %s15, 1
    %p28 = por %p26, %p27
    %p29 = scmp.ne.s32.totalorder %s20, %s21
    %p30 = scmp.eq.s32.totalorder %s15, 0
    %p31 = por %p29, %p30
    %p32 = scmp.ne.s32.totalorder %s20, %s21
    %p33 = scmp.eq.s32.totalorder %s16, 1
    %p34 = por %p32, %p33
    %p36 = scmp.ne.s32.totalorder %s21, %s35
    %p37 = scmp.eq.s32.totalorder %s16, 0
    %p38 = por %p36, %p37
    %s40 = sadd.s32 %s39, 1
    %p43 = scmp.eq.s32.totalorder %s10, 1
    %p44 = scmp.ne.s32.totalorder %s39, %s41
    %p45 = scmp.eq.s32.totalorder %s10, 0
    %p46 = por %p44, %p45
    %p47 = scmp.ne.s32.totalorder %s39, %s41
    %p48 = scmp.eq.s32.totalorder %s15, 1
    %p49 = por %p47, %p48
    %p50 = scmp.ne.s32.totalorder %s41, %s42
    %p51 = scmp.eq.s32.totalorder %s15, 0
    %p52 = por %p50, %p51
    %p53 = scmp.ne.s32.totalorder %s41, %s42
    %p54 = scmp.eq.s32.totalorder %s16, 1
    %p55 = por %p53, %p54
    %p57 = scmp.ne.s32.totalorder %s42, %s56
    %p58 = scmp.eq.s32.totalorder %s16, 0
    %p59 = por %p57, %p58
    %s60 = ssub.s32 %s10, %s17
    %p61 = scmp.eq.s32.totalorder %s60, 0
    %s63 = sadd.s32 %s62, 1
    %s64 = scalar_select %p61, %s62, %s63
    %p67 = pneg %p61
    %p68 = scmp.eq.s32.totalorder %s10, 1
    %p69 = por %p67, %p68
    %p70 = scmp.ne.s32.totalorder %s62, %s65
    %p71 = scmp.eq.s32.totalorder %s10, 0
    %p72 = por %p70, %p71
    %p73 = scmp.ne.s32.totalorder %s62, %s65
    %p74 = scmp.eq.s32.totalorder %s15, 1
    %p75 = por %p73, %p74
    %p76 = scmp.ne.s32.totalorder %s65, %s66
    %p77 = scmp.eq.s32.totalorder %s15, 0
    %p78 = por %p76, %p77
    %p79 = scmp.ne.s32.totalorder %s65, %s66
    %p80 = scmp.eq.s32.totalorder %s16, 1
    %p81 = por %p79, %p80
    %p83 = scmp.ne.s32.totalorder %s66, %s82
    %p84 = scmp.eq.s32.totalorder %s16, 0
    %p85 = por %p83, %p84
    %s86 = ssub.s32 %s10, %s17
    %p87 = scmp.eq.s32.totalorder %s86, 0
    %s89 = sadd.s32 %s88, 1
    %s90 = scalar_select %p87, %s88, %s89
    %p93 = pneg %p87
    %p94 = scmp.eq.s32.totalorder %s10, 1
    %p95 = por %p93, %p94
    %p96 = scmp.ne.s32.totalorder %s88, %s91
    %p97 = scmp.eq.s32.totalorder %s10, 0
    %p98 = por %p96, %p97
    %p99 = scmp.ne.s32.totalorder %s88, %s91
    %p100 = scmp.eq.s32.totalorder %s15, 1
    %p101 = por %p99, %p100
    %p102 = scmp.ne.s32.totalorder %s91, %s92
    %p103 = scmp.eq.s32.totalorder %s15, 0
    %p104 = por %p102, %p103
    %p105 = scmp.ne.s32.totalorder %s91, %s92
    %p106 = scmp.eq.s32.totalorder %s16, 1
    %p107 = por %p105, %p106
    %p109 = scmp.ne.s32.totalorder %s92, %s108
    %p110 = scmp.eq.s32.totalorder %s16, 0
    %p111 = por %p109, %p110
    %s112 = ssub.s32 %s10, %s17
    %p113 = scmp.eq.s32.totalorder %s112, 0
    %s115 = sadd.s32 %s114, 1
    %s116 = scalar_select %p113, %s114, %s115
    %p119 = pneg %p113
    %p120 = scmp.eq.s32.totalorder %s10, 1
    %p121 = por %p119, %p120
    %p122 = scmp.ne.s32.totalorder %s114, %s117
    %p123 = scmp.eq.s32.totalorder %s10, 0
    %p124 = por %p122, %p123
    %p125 = scmp.ne.s32.totalorder %s114, %s117
    %p126 = scmp.eq.s32.totalorder %s15, 1
    %p127 = por %p125, %p126
    %p128 = scmp.ne.s32.totalorder %s117, %s118
    %p129 = scmp.eq.s32.totalorder %s15, 0
    %p130 = por %p128, %p129
    %p131 = scmp.ne.s32.totalorder %s117, %s118
    %p132 = scmp.eq.s32.totalorder %s16, 1
    %p133 = por %p131, %p132
    %p135 = scmp.ne.s32.totalorder %s118, %s134
    %p136 = scmp.eq.s32.totalorder %s16, 0
    %p137 = por %p135, %p136
    %p138 = scmp.le.s32.totalorder 1, %s10
    %p139 = scmp.lt.s32.totalorder %s10, 3
    %p140 = pnand %p138, %p139
    %p141 = pneg %p140
    // Predicated region
    $region9: #{res_layer_forward.1} parent=5 // pred_check
      _
    $region10: #{res_layer_forward.1} parent=5 // pred_check_branch
      %143 = sbr.rel (%p140) target = $region12
    $region11: #{res_layer_forward.1} parent=5 // pred_region
      %s144 = ssub.s32 %s10, 1
      // Predicated region
      $region13: #{res_layer_forward.1} parent=11 // pred_check
        %p145 = pneg %p31
      $region14: #{res_layer_forward.1} parent=11 // pred_check_branch
        %147 = sbr.rel (%p145) target = $region16
      $region15: #{res_layer_forward.1} parent=11 // pred_region
        _
      $region16: #{res_layer_forward.1} parent=11 // pred_fallthru
        _
      // Predicated region
      $region17: #{res_layer_forward.1} parent=11 // pred_check
        %p148 = pneg %p52
      $region18: #{res_layer_forward.1} parent=11 // pred_check_branch
        %150 = sbr.rel (%p148) target = $region20
      $region19: #{res_layer_forward.1} parent=11 // pred_region
        _
      $region20: #{res_layer_forward.1} parent=11 // pred_fallthru
        _
    $region12: #{res_layer_forward.1} parent=5 // pred_fallthru
      _
    %p151 = scmp.lt.s32.totalorder %s10, 2
    // Predicated region
    $region21: #{res_layer_forward.1} parent=5 // pred_check
      %p152 = pneg %p151
    $region22: #{res_layer_forward.1} parent=5 // pred_check_branch
      %154 = sbr.rel (%p152) target = $region24
    $region23: #{res_layer_forward.1} parent=5 // pred_region
      // Predicated region
      $region25: #{res_layer_forward.1} parent=23 // pred_check
        %p155 = pneg %p72
      $region26: #{res_layer_forward.1} parent=23 // pred_check_branch
        %157 = sbr.rel (%p155) target = $region28
      $region27: #{res_layer_forward.1} parent=23 // pred_region
        %p158 = scmp.lt.s32.totalorder %s10, 1
        %s159 = scalar_select %p158, %s10, 1
        %s160 = smul.addr %s159, 2
        %s161 = smul.addr %s160, 4
        %s162 = scalar_lea.vmem %s2, %s161
      $region28: #{res_layer_forward.1} parent=23 // pred_fallthru
        _
      // Predicated region
      $region29: #{res_layer_forward.1} parent=23 // pred_check
        %p163 = pneg %p98
      $region30: #{res_layer_forward.1} parent=23 // pred_check_branch
        %165 = sbr.rel (%p163) target = $region32
      $region31: #{res_layer_forward.1} parent=23 // pred_region
        %p166 = scmp.lt.s32.totalorder %s10, 1
        %s167 = scalar_select %p166, %s10, 1
        %s168 = smul.addr %s167, 2
        %s169 = smul.addr %s168, 8
        %s170 = scalar_lea.vmem %s3, %s169
      $region32: #{res_layer_forward.1} parent=23 // pred_fallthru
        _
    $region24: #{res_layer_forward.1} parent=5 // pred_fallthru
      _
    %p171 = scmp.le.s32.totalorder 1, %s10
    %p172 = scmp.lt.s32.totalorder %s10, 3
    %p173 = pnand %p171, %p172
    %p174 = pneg %p173
    // Predicated region
    $region33: #{res_layer_forward.1} parent=5 // pred_check
      _
    $region34: #{res_layer_forward.1} parent=5 // pred_check_branch
      %176 = sbr.rel (%p173) target = $region36
    $region35: #{res_layer_forward.1} parent=5 // pred_region
      %s177 = ssub.s32 %s10, 1
      %p178 = pneg %p31
      %p179 = pneg %p28
      %p180 = pneg %p52
      %p181 = pneg %p49
      %p182 = scmp.lt.s32.totalorder %s15, 1
      %s183 = scalar_select %p182, %s15, 1
      %s184 = smul.addr %s183, 2
      %s185 = smul.addr %s184, 4
      %s186 = scalar_lea.vmem %s2, %s185
      %p187 = pneg %p78
      %p188 = pneg %p75
      %p189 = scmp.lt.s32.totalorder %s15, 1
      %s190 = scalar_select %p189, %s15, 1
      %s191 = smul.addr %s190, 2
      %s192 = smul.addr %s191, 8
      %s193 = scalar_lea.vmem %s3, %s192
      %p194 = pneg %p104
      %p195 = pneg %p101
      %p196 = pneg %p130
      %p197 = pneg %p127
      %p198 = scmp.lt.s32.totalorder %s15, 1
      %s199 = scalar_select %p198, %s15, 1
      %s200 = smul.addr %s199, 2
      %s201 = smul.addr %s200, 8
      %s202 = scalar_lea.vmem %s4, %s201
      %p203 = scmp.lt.s32.totalorder %s15, 1
      %s204 = scalar_select %p203, %s15, 1
      %s205 = smul.addr %s204, 2
      %s206 = smul.addr %s205, 4
      %s207 = scalar_lea.vmem %s2, %s206
      %p208 = scmp.lt.s32.totalorder %s15, 1
      %s209 = scalar_select %p208, %s15, 1
      %s210 = smul.addr %s209, 2
      %s211 = smul.addr %s210, 8
      %s212 = scalar_lea.vmem %s3, %s211
      %p213 = scmp.lt.s32.totalorder %s15, 1
      %s214 = scalar_select %p213, %s15, 1
      %s215 = smul.addr %s214, 2
      %s216 = smul.addr %s215, 8
      %s217 = scalar_lea.vmem %s4, %s216
      %v219 = vld [vmem:[%s207] sm:$0xff]
      %v220 = vld [vmem:[%s0] sm:$0xff]
      %v221 = vpack.c.bf16 %v220, %v220
      %v223 = vcombine.high %v219, %v219
      %v225 = vpack.c.bf16 %v219, %v219
      %v226 = vpack.c.bf16 %v223, %v223
      %v227 = vld [vmem:[%s1] sm:$0xff]
      %229 = vset.pattern.permute.xlu0 0
      %230 = vperm.xlu0 %229, %v227
      %v231 = vpop.permute.xlu0 %230
      %vm233 = vcmask 31744
      %v235 = vsel %vm233, %v221, 0
      %vm237 = vcmask 1041408
      %v239 = vsel %vm237, %v225, 0
      %v242 = vsel %vm237, %v226, 0
      %244 = vmatprep.subr.bf16.mxu0 %v242
      %245 = vmatpush1.bf16.msra.mxu0 %v239
      %246 = vmatprep.subr.bf16.mxu0 0
      %247 = vmatpush1.bf16.msra.mxu0 0
      %248 = vmatprep.subr.bf16.mxu0 0
      %249 = vmatpush1.bf16.msra.mxu0 0
      %250 = vmatprep.subr.bf16.mxu0 0
      %251 = vmatpush1.bf16.msra.mxu0 0
      %252 = vmatprep.subr.bf16.mxu0 0
      %253 = vmatpush1.bf16.msra.mxu0 0
      %254 = vmatprep.subr.bf16.mxu0 0
      %255 = vmatpush1.bf16.msra.mxu0 0
      %256 = vmatprep.subr.bf16.mxu0 0
      %257 = vmatpush1.bf16.msra.mxu0 0
      %258 = vmatprep.subr.bf16.mxu0 0
      %259 = vmatpush1.bf16.msra.mxu0 0
      %260 = vmatprep.subr.bf16.mxu0 0
      %261 = vmatpush1.bf16.msra.mxu0 0
      %262 = vmatprep.subr.bf16.mxu0 0
      %263 = vmatpush1.bf16.msra.mxu0 0
      %264 = vmatprep.subr.bf16.mxu0 0
      %265 = vmatpush1.bf16.msra.mxu0 0
      %266 = vmatprep.subr.bf16.mxu0 0
      %267 = vmatpush1.bf16.msra.mxu0 0
      %268 = vmatprep.subr.bf16.mxu0 0
      %269 = vmatpush1.bf16.msra.mxu0 0
      %270 = vmatprep.subr.bf16.mxu0 0
      %271 = vmatpush1.bf16.msra.mxu0 0
      %272 = vmatprep.subr.bf16.mxu0 0
      %273 = vmatpush1.bf16.msra.mxu0 0
      %274 = vmatprep.subr.bf16.mxu0 0
      %275 = vmatpush1.bf16.msra.mxu0 0
      %276 = vmatprep.mubr.bf16.mxu0 0
      %277 = vmatmul.mubr.bf16.gmra.mrb[0].mxu0 %v235
      %v278 = vpop.f32.mrb[0].mxu0
      %v279 = vadd.f32 %v231, %v278
      %v280 = vpop.f32.mrb[0].mxu0
      %v281 = vadd.f32 %v231, %v280
      %v282 = vpop.f32.mrb[0].mxu0
      %v283 = vpop.f32.mrb[0].mxu0
      %284 = vdwg.mxu0
      %v285 = vld [vmem:[%s212] sm:$0xff]
      %v286 = vld [vmem:[%s212 + $0x8] sm:$0xff]
      %v287 = vadd.f32 %v279, %v285
      %v288 = vadd.f32 %v281, %v286
      %289 = vst [vmem:[%s217] sm:$0xff] %v287
      %290 = vst [vmem:[%s217 + $0x8] sm:$0xff] %v288
      %p291 = scmp.lt.s32.totalorder %s15, 1
      %s292 = scalar_select %p291, %s15, 1
      %s293 = smul.addr %s292, 2
      %s294 = smul.addr %s293, 8
      %s295 = scalar_lea.vmem %s4, %s294
      // Predicated region
      $region37: #{res_layer_forward.1} parent=35 // pred_check
        %p296 = pneg %p127
      $region38: #{res_layer_forward.1} parent=35 // pred_check_branch
        %298 = sbr.rel (%p296) target = $region40
      $region39: #{res_layer_forward.1} parent=35 // pred_region
        _
      $region40: #{res_layer_forward.1} parent=35 // pred_fallthru
        _
    $region36: #{res_layer_forward.1} parent=5 // pred_fallthru
      _
    %p299 = scmp.le.s32.totalorder 2, %s10
    // Predicated region
    $region41: #{res_layer_forward.1} parent=5 // pred_check
      %p300 = pneg %p299
    $region42: #{res_layer_forward.1} parent=5 // pred_check_branch
      %302 = sbr.rel (%p300) target = $region44
    $region43: #{res_layer_forward.1} parent=5 // pred_region
      %s303 = ssub.s32 %s10, 2
      // Predicated region
      $region45: #{res_layer_forward.1} parent=43 // pred_check
        %p304 = pneg %p133
      $region46: #{res_layer_forward.1} parent=43 // pred_check_branch
        %306 = sbr.rel (%p304) target = $region48
      $region47: #{res_layer_forward.1} parent=43 // pred_region
        %p307 = scmp.lt.s32.totalorder %s16, 1
        %s308 = scalar_select %p307, %s16, 1
        %s309 = smul.addr %s308, 2
        %s310 = smul.addr %s309, 8
        %s311 = scalar_lea.vmem %s4, %s310
      $region48: #{res_layer_forward.1} parent=43 // pred_fallthru
        _
    $region44: #{res_layer_forward.1} parent=5 // pred_fallthru
      _
  $region6: #{res_layer_forward.1} parent=0 // loop_footer
    %s14 = sadd.s32 1, %s10
  $region7: #{res_layer_forward.1} parent=0 // loop_footer_branch
    %9 = sbr.rel target = $region3
  $region8: #{res_layer_forward.1} parent=0 // loop_exit
    _

</llo_original>
